<compile_context>
chip_gen: v6e
topology: v6e:2x2x1
jax: 0.10.0
libtpu: 0.0.40
codegen_flags: <defaults>
</compile_context>

<pallas_src>
import functools

import jax
import jax.numpy as jnp
from jax.experimental import pallas as pl
from jax.experimental.pallas import tpu as pltpu


_LANE = 128
_VMEM_BLOCK_BUDGET = 16 * 1024 * 1024   # bytes of pipelined blocks / DMA scratch
_VMEM_LIMIT = 32 * 1024 * 1024          # scoped VMEM limit (safe on v5e..v7x)
_FUSED_GATHER_MIN_ROW_BYTES = 1024      # fuse the gather when one row DMA >= 1 KiB


# --------------------------------------------------------------------------
# Path 1: XLA-side fused gather+combine, kernel does square / reduce / sqrt.
# --------------------------------------------------------------------------
def _norm_kernel(d_ref, out_ref):
    # d_ref:   (tb, E) f32 block  (batch on sublanes, embedding on lanes)
    # out_ref: (tb, 1) f32 block  (tiny -> masked store cost is negligible)
    d = d_ref[...]
    out_ref[...] = jnp.sqrt(jnp.sum(d * d, axis=-1, keepdims=True))


# --------------------------------------------------------------------------
# Path 2: in-kernel gather.  Indices live in SMEM (scalar prefetch), tables
# stay in HBM, rows are DMA'd per-tile into double-buffered VMEM scratch.
# --------------------------------------------------------------------------
def _fused_gather_kernel(si_ref, pi_ref, oi_ref,        # SMEM (B_pad,) int32
                         nodes_ref, rels_ref,            # HBM refs (pl.ANY)
                         out_ref,                        # (tb, 1) f32 block
                         s_buf, p_buf, o_buf,            # VMEM (2, tb, E) f32
                         sems):                          # DMA sems (3, 2)
    tile = pl.program_id(0)
    ntiles = pl.num_programs(0)
    tb = s_buf.shape[1]
    slot = tile & 1

    def issue_tile(t, slot_):
        base = t * tb

        @pl.loop(0, tb)
        def _(r):
            s_row = si_ref[base + r]
            p_row = pi_ref[base + r]
            o_row = oi_ref[base + r]
            pltpu.make_async_copy(nodes_ref.at[pl.ds(s_row, 1), :],
                                  s_buf.at[slot_, pl.ds(r, 1), :],
                                  sems.at[0, slot_]).start()
            pltpu.make_async_copy(rels_ref.at[pl.ds(p_row, 1), :],
                                  p_buf.at[slot_, pl.ds(r, 1), :],
                                  sems.at[1, slot_]).start()
            pltpu.make_async_copy(nodes_ref.at[pl.ds(o_row, 1), :],
                                  o_buf.at[slot_, pl.ds(r, 1), :],
                                  sems.at[2, slot_]).start()

    def wait_tile(slot_):
        # One wait per issued row copy; every copy on a given semaphore has the
        # identical (1, E) size, so signals and waits balance exactly.
        @pl.loop(0, tb)
        def _(r):
            pltpu.make_async_copy(nodes_ref.at[pl.ds(0, 1), :],
                                  s_buf.at[slot_, pl.ds(r, 1), :],
                                  sems.at[0, slot_]).wait()
            pltpu.make_async_copy(rels_ref.at[pl.ds(0, 1), :],
                                  p_buf.at[slot_, pl.ds(r, 1), :],
                                  sems.at[1, slot_]).wait()
            pltpu.make_async_copy(nodes_ref.at[pl.ds(0, 1), :],
                                  o_buf.at[slot_, pl.ds(r, 1), :],
                                  sems.at[2, slot_]).wait()

    # Prime the pipeline with tile 0 on the very first grid step.
    @pl.when(tile == 0)
    def _():
        issue_tile(0, 0)

    # Prefetch the next tile's rows into the other slot before blocking on the
    # current one, so the gather DMAs overlap this tile's reduce.
    @pl.when(tile + 1 < ntiles)
    def _():
        issue_tile(tile + 1, 1 - slot)

    wait_tile(slot)

    d = s_buf[slot] + p_buf[slot] - o_buf[slot]          # (tb, E), VPU
    out_ref[...] = jnp.sqrt(jnp.sum(d * d, axis=-1, keepdims=True))


# --------------------------------------------------------------------------
# Tile selection: biggest lane-multiple batch tile that fits the VMEM budget.
# --------------------------------------------------------------------------
def _round_down_lanes(x):
    return max(_LANE, (int(x) // _LANE) * _LANE)


def _pick_batch_tile(b, per_row_vmem_bytes, cap, split_for_megacore):
    tb = _round_down_lanes(_VMEM_BLOCK_BUDGET // max(per_row_vmem_bytes, 1))
    tb = min(tb, cap)
    b_lanes = int(pl.cdiv(b, _LANE)) * _LANE
    if split_for_megacore and b_lanes > _LANE:
        # v7x has 2 TensorCores: make sure a "parallel" grid has >= 2 steps.
        tb = min(tb, _round_down_lanes(b_lanes // 2))
    return min(tb, b_lanes)


# --------------------------------------------------------------------------
# Public wrapper (semantics of TransE.forward).
# --------------------------------------------------------------------------
@functools.partial(jax.jit, static_argnames=("forward", "max_batch_tile"))
def transe_score(triples, nodes, relations, forward=True, max_batch_tile=None):
    """TransE score:  ||nodes[s] + relations[p] - nodes[o]||_2  per triple.

    triples:   (B, 3) int32
    nodes:     (num_entities, E) float
    relations: (num_relations, E) float
    returns:   (B,) float32
    """
    b = triples.shape[0]
    e = nodes.shape[1]

    s_col, o_col = (0, 2) if forward else (2, 0)
    si = triples[:, s_col].astype(jnp.int32)
    pi = triples[:, 1].astype(jnp.int32)
    oi = triples[:, o_col].astype(jnp.int32)

    fuse_gather = e * 4 >= _FUSED_GATHER_MIN_ROW_BYTES

    if fuse_gather:
        per_row = 3 * 2 * e * 4          # 3 tables x double-buffered scratch
        cap = 1024
    else:
        per_row = 2 * e * 4              # single pipelined input (2 buffers)
        cap = 2048
    if max_batch_tile is not None:
        cap = min(cap, _round_down_lanes(max_batch_tile))
    tb = _pick_batch_tile(b, per_row, cap=cap, split_for_megacore=not fuse_gather)

    b_pad = int(pl.cdiv(b, tb)) * tb
    pad = b_pad - b
    if pad:
        zpad = jnp.zeros((pad,), dtype=jnp.int32)
        si = jnp.concatenate([si, zpad])
        pi = jnp.concatenate([pi, zpad])
        oi = jnp.concatenate([oi, zpad])

    grid = (b_pad // tb,)
    out_shape = jax.ShapeDtypeStruct((b_pad, 1), jnp.float32)

    if fuse_gather:
        out = pl.pallas_call(
            _fused_gather_kernel,
            out_shape=out_shape,
            grid_spec=pltpu.PrefetchScalarGridSpec(
                num_scalar_prefetch=3,
                grid=grid,
                in_specs=[pl.BlockSpec(memory_space=pl.ANY),
                          pl.BlockSpec(memory_space=pl.ANY)],
                out_specs=pl.BlockSpec((tb, 1), lambda i, si_r, pi_r, oi_r: (i, 0)),
                scratch_shapes=[pltpu.VMEM((2, tb, e), jnp.float32),
                                pltpu.VMEM((2, tb, e), jnp.float32),
                                pltpu.VMEM((2, tb, e), jnp.float32),
                                pltpu.SemaphoreType.DMA((3, 2))]),
            compiler_params=pltpu.CompilerParams(
                # manual cross-step double buffering needs an in-order grid
                dimension_semantics=("arbitrary",),
                vmem_limit_bytes=_VMEM_LIMIT),
        )(si, pi, oi, nodes.astype(jnp.float32), relations.astype(jnp.float32))
    else:
        # XLA fuses the three row-gathers with the elementwise combine; only a
        # single (B_pad, E) array crosses the Pallas boundary, no transpose.
        d = (jnp.take(nodes, si, axis=0)
             + jnp.take(relations, pi, axis=0)
             - jnp.take(nodes, oi, axis=0)).astype(jnp.float32)
        out = pl.pallas_call(
            _norm_kernel,
            out_shape=out_shape,
            grid_spec=pl.GridSpec(
                grid=grid,
                in_specs=[pl.BlockSpec((tb, e), lambda i: (i, 0))],
                out_specs=pl.BlockSpec((tb, 1), lambda i: (i, 0))),
            compiler_params=pltpu.CompilerParams(
                dimension_semantics=("parallel",),
                vmem_limit_bytes=_VMEM_LIMIT),
        )(d)

    return out[:b, 0]


def transe_reference(triples, nodes, relations, forward=True):
    a, c = (0, 2) if forward else (2, 0)
    s = nodes[triples[:, a], :]
    p = relations[triples[:, 1], :]
    o = nodes[triples[:, c], :]
    return jnp.linalg.norm(s + p - o, axis=1)


if __name__ == "__main__":
    key = jax.random.PRNGKey(0)
    k1, k2, k3, k4, k5, k6, k7 = jax.random.split(key, 7)

    # --- small-E case (E=32): XLA gather + pre-combined single-input kernel ---
    num_entities, num_relations, e, batch = 16, 4, 32, 8
    nodes = jax.random.normal(k1, (num_entities, e), dtype=jnp.float32)
    relations = jax.random.normal(k2, (num_relations, e), dtype=jnp.float32)
    triples = jnp.stack([
        jax.random.randint(k3, (batch,), 0, num_entities, dtype=jnp.int32),
        jax.random.randint(k4, (batch,), 0, num_relations, dtype=jnp.int32),
        jax.random.randint(k5, (batch,), 0, num_entities, dtype=jnp.int32)],
        axis=1)

    scores = jax.block_until_ready(
        transe_score(triples, nodes, relations, forward=True))
    ref = transe_reference(triples, nodes, relations, forward=True)
    assert scores.shape == (batch,)
    assert jnp.allclose(scores, ref, rtol=1e-5, atol=1e-5)

    scores_bwd = jax.block_until_ready(
        transe_score(triples, nodes, relations, forward=False))
    ref_bwd = transe_reference(triples, nodes, relations, forward=False)
    assert jnp.allclose(scores_bwd, ref_bwd, rtol=1e-5, atol=1e-5)

    # --- wide-E case (E=256): fused in-kernel gather (manual row DMAs) ------
    num_entities2, num_relations2, e2, batch2 = 64, 8, 256, 300
    nodes2 = jax.random.normal(k6, (num_entities2, e2), dtype=jnp.float32)
    relations2 = jax.random.normal(k7, (num_relations2, e2), dtype=jnp.float32)
    kk = jax.random.split(k3, 3)
    triples2 = jnp.stack([
        jax.random.randint(kk[0], (batch2,), 0, num_entities2, dtype=jnp.int32),
        jax.random.randint(kk[1], (batch2,), 0, num_relations2, dtype=jnp.int32),
        jax.random.randint(kk[2], (batch2,), 0, num_entities2, dtype=jnp.int32)],
        axis=1)

    # max_batch_tile=128 keeps the demo tiny while still exercising the
    # multi-tile (grid=3) double-buffered prefetch path of the fused kernel.
    scores2 = jax.block_until_ready(
        transe_score(triples2, nodes2, relations2, forward=True,
                     max_batch_tile=128))
    ref2 = transe_reference(triples2, nodes2, relations2, forward=True)
    assert scores2.shape == (batch2,)
    assert jnp.allclose(scores2, ref2, rtol=1e-5, atol=1e-4)

    print("KERNEL_OK")
</pallas_src>

<mosaic_0001>
module attributes {stable_mosaic.version = 11 : i64} {
  func.func @_norm_kernel(%arg0: i32, %arg1: memref<128x32xf32, #tpu.memory_space<vmem>>, %arg2: memref<128x1xf32, #tpu.memory_space<vmem>>) attributes {dimension_semantics = [#tpu.dimension_semantics<parallel>], iteration_bounds = array<i64: 1>, scalar_prefetch = 0 : i64, scratch_operands = 0 : i64, tpu.core_type = #tpu.core_type<tc>, window_params = [{transform_indices = @transform_0, window_bounds = array<i64: 128, 32>}, {transform_indices = @transform_1, window_bounds = array<i64: 128, 1>}]} {
    %c0 = arith.constant 0 : index
    %c0_0 = arith.constant 0 : index
    %0 = vector.load %arg1[%c0, %c0_0] : memref<128x32xf32, #tpu.memory_space<vmem>>, vector<128x32xf32>
    %1 = arith.mulf %0, %0 : vector<128x32xf32>
    %cst = arith.constant dense<0.000000e+00> : vector<128xf32>
    %2 = vector.multi_reduction <add>, %1, %cst [1] : vector<128x32xf32> to vector<128xf32>
    %3 = vector.shape_cast %2 : vector<128xf32> to vector<128x1xf32>
    %4 = math.sqrt %3 : vector<128x1xf32>
    %c0_1 = arith.constant 0 : index
    %c0_2 = arith.constant 0 : index
    %5 = vector.load %arg2[%c0_1, %c0_2] : memref<128x1xf32, #tpu.memory_space<vmem>>, vector<128x1xf32>
    tpu.vector_store %arg2[%c0_1, %c0_2], %4 {strides = array<i32>} : memref<128x1xf32, #tpu.memory_space<vmem>>, vector<128x1xf32>,
    return
  }
  func.func @transform_0(%arg0: i32) -> (i32, i32) {
    %c0_i32 = arith.constant 0 : i32
    %c0_i32_0 = arith.constant 0 : i32
    return %arg0, %c0_i32 : i32, i32
  }
  func.func @transform_1(%arg0: i32) -> (i32, i32) {
    %c0_i32 = arith.constant 0 : i32
    %c0_i32_0 = arith.constant 0 : i32
    return %arg0, %c0_i32 : i32, i32
  }
}

</mosaic_0001>

<llo_original>
// kernel: transe_score.1
$region0: #{transe_score.1}
  #allocation0 [shape = 'u32[]', space=smem, size = 0x4, offset = 0x4, fixed_abs, tag = 'smem constant byte address 0x4 - core index']
  #allocation1 [shape = 'u32[144,128]{1,0:T(1,128)}', space=vmem, size = 0x12000, scoped, tag = 'internal scratch']
  %s0 = inlined_call_operand.vmem [shape: f32[128,32], index: 0, kind: input, shape index: {}]
  %s1 = inlined_call_operand.vmem [shape: f32[128,1], index: 1, kind: output, shape index: {}]
  %s2 = sld [smem:[#allocation0]]
  $region14: #{transe_score.1} parent=0
    _
  %s4 = ssub.s32 1, %s2
  %s5 = scalar_select 0, %s4, %s2
  // Predicated region
  $region2: #{transe_score.1} parent=0 // pred_check
    _
  $region3: #{transe_score.1} parent=0 // pred_check_branch
    %7 = sbr.rel (0) target = $region5
  $region4: #{transe_score.1} parent=0 // pred_region
    _
  $region5: #{transe_score.1} parent=0 // pred_fallthru
    _
  %v8 = vld [vmem:[%s0] sm:$0xff]
  %v9 = vld [vmem:[%s0 + $0x8] sm:$0xff]
  %v10 = vld [vmem:[%s0 + $0x10] sm:$0xff]
  %v11 = vld [vmem:[%s0 + $0x18] sm:$0xff]
  %v12 = vld [vmem:[%s0 + $0x20] sm:$0xff]
  %v13 = vld [vmem:[%s0 + $0x28] sm:$0xff]
  %v14 = vld [vmem:[%s0 + $0x30] sm:$0xff]
  %v15 = vld [vmem:[%s0 + $0x38] sm:$0xff]
  %v16 = vld [vmem:[%s0 + $0x40] sm:$0xff]
  %v17 = vld [vmem:[%s0 + $0x48] sm:$0xff]
  %v18 = vld [vmem:[%s0 + $0x50] sm:$0xff]
  %v19 = vld [vmem:[%s0 + $0x58] sm:$0xff]
  %v20 = vld [vmem:[%s0 + $0x60] sm:$0xff]
  %v21 = vld [vmem:[%s0 + $0x68] sm:$0xff]
  %v22 = vld [vmem:[%s0 + $0x70] sm:$0xff]
  %v23 = vld [vmem:[%s0 + $0x78] sm:$0xff]
  %v24 = vmul.f32 %v8, %v8
  %v25 = vmul.f32 %v9, %v9
  %v26 = vmul.f32 %v10, %v10
  %v27 = vmul.f32 %v11, %v11
  %v28 = vmul.f32 %v12, %v12
  %v29 = vmul.f32 %v13, %v13
  %v30 = vmul.f32 %v14, %v14
  %v31 = vmul.f32 %v15, %v15
  %v32 = vmul.f32 %v16, %v16
  %v33 = vmul.f32 %v17, %v17
  %v34 = vmul.f32 %v18, %v18
  %v35 = vmul.f32 %v19, %v19
  %v36 = vmul.f32 %v20, %v20
  %v37 = vmul.f32 %v21, %v21
  %v38 = vmul.f32 %v22, %v22
  %v39 = vmul.f32 %v23, %v23
  %vm40 = vcmask 261120
  %v41 = vsel %vm40, %v24, 0.0
  %42 = vadd.xlane.f32.xlu0 %v41
  %v43 = vpop.xlane.xlu0 %42
  %v44 = vsel %vm40, %v25, 0.0
  %45 = vadd.xlane.f32.xlu0 %v44
  %v46 = vpop.xlane.xlu0 %45
  %v47 = vsel %vm40, %v26, 0.0
  %48 = vadd.xlane.f32.xlu0 %v47
  %v49 = vpop.xlane.xlu0 %48
  %v50 = vsel %vm40, %v27, 0.0
  %51 = vadd.xlane.f32.xlu0 %v50
  %v52 = vpop.xlane.xlu0 %51
  %v53 = vsel %vm40, %v28, 0.0
  %54 = vadd.xlane.f32.xlu0 %v53
  %v55 = vpop.xlane.xlu0 %54
  %v56 = vsel %vm40, %v29, 0.0
  %57 = vadd.xlane.f32.xlu0 %v56
  %v58 = vpop.xlane.xlu0 %57
  %v59 = vsel %vm40, %v30, 0.0
  %60 = vadd.xlane.f32.xlu0 %v59
  %v61 = vpop.xlane.xlu0 %60
  %v62 = vsel %vm40, %v31, 0.0
  %63 = vadd.xlane.f32.xlu0 %v62
  %v64 = vpop.xlane.xlu0 %63
  %v65 = vsel %vm40, %v32, 0.0
  %66 = vadd.xlane.f32.xlu0 %v65
  %v67 = vpop.xlane.xlu0 %66
  %v68 = vsel %vm40, %v33, 0.0
  %69 = vadd.xlane.f32.xlu0 %v68
  %v70 = vpop.xlane.xlu0 %69
  %v71 = vsel %vm40, %v34, 0.0
  %72 = vadd.xlane.f32.xlu0 %v71
  %v73 = vpop.xlane.xlu0 %72
  %v74 = vsel %vm40, %v35, 0.0
  %75 = vadd.xlane.f32.xlu0 %v74
  %v76 = vpop.xlane.xlu0 %75
  %v77 = vsel %vm40, %v36, 0.0
  %78 = vadd.xlane.f32.xlu0 %v77
  %v79 = vpop.xlane.xlu0 %78
  %v80 = vsel %vm40, %v37, 0.0
  %81 = vadd.xlane.f32.xlu0 %v80
  %v82 = vpop.xlane.xlu0 %81
  %v83 = vsel %vm40, %v38, 0.0
  %84 = vadd.xlane.f32.xlu0 %v83
  %v85 = vpop.xlane.xlu0 %84
  %v86 = vsel %vm40, %v39, 0.0
  %87 = vadd.xlane.f32.xlu0 %v86
  %v88 = vpop.xlane.xlu0 %87
  %v89 = vrsqrt.pop %v43
  %v90 = vmul.f32 %v43, %v89
  %vm91 = vcmp.eq.f32.partialorder %v43, inf
  %v92 = vsel %vm91, %v43, %v90
  %vm93 = vcmp.eq.f32.partialorder %v43, 0.0
  %v94 = vand.u32 %v43, 2147483648
  %v95 = vsel %vm93, %v94, %v92
  %v96 = vrsqrt.pop %v46
  %v97 = vmul.f32 %v46, %v96
  %vm98 = vcmp.eq.f32.partialorder %v46, inf
  %v99 = vsel %vm98, %v46, %v97
  %vm100 = vcmp.eq.f32.partialorder %v46, 0.0
  %v101 = vand.u32 %v46, 2147483648
  %v102 = vsel %vm100, %v101, %v99
  %v103 = vrsqrt.pop %v49
  %v104 = vmul.f32 %v49, %v103
  %vm105 = vcmp.eq.f32.partialorder %v49, inf
  %v106 = vsel %vm105, %v49, %v104
  %vm107 = vcmp.eq.f32.partialorder %v49, 0.0
  %v108 = vand.u32 %v49, 2147483648
  %v109 = vsel %vm107, %v108, %v106
  %v110 = vrsqrt.pop %v52
  %v111 = vmul.f32 %v52, %v110
  %vm112 = vcmp.eq.f32.partialorder %v52, inf
  %v113 = vsel %vm112, %v52, %v111
  %vm114 = vcmp.eq.f32.partialorder %v52, 0.0
  %v115 = vand.u32 %v52, 2147483648
  %v116 = vsel %vm114, %v115, %v113
  %v117 = vrsqrt.pop %v55
  %v118 = vmul.f32 %v55, %v117
  %vm119 = vcmp.eq.f32.partialorder %v55, inf
  %v120 = vsel %vm119, %v55, %v118
  %vm121 = vcmp.eq.f32.partialorder %v55, 0.0
  %v122 = vand.u32 %v55, 2147483648
  %v123 = vsel %vm121, %v122, %v120
  %v124 = vrsqrt.pop %v58
  %v125 = vmul.f32 %v58, %v124
  %vm126 = vcmp.eq.f32.partialorder %v58, inf
  %v127 = vsel %vm126, %v58, %v125
  %vm128 = vcmp.eq.f32.partialorder %v58, 0.0
  %v129 = vand.u32 %v58, 2147483648
  %v130 = vsel %vm128, %v129, %v127
  %v131 = vrsqrt.pop %v61
  %v132 = vmul.f32 %v61, %v131
  %vm133 = vcmp.eq.f32.partialorder %v61, inf
  %v134 = vsel %vm133, %v61, %v132
  %vm135 = vcmp.eq.f32.partialorder %v61, 0.0
  %v136 = vand.u32 %v61, 2147483648
  %v137 = vsel %vm135, %v136, %v134
  %v138 = vrsqrt.pop %v64
  %v139 = vmul.f32 %v64, %v138
  %vm140 = vcmp.eq.f32.partialorder %v64, inf
  %v141 = vsel %vm140, %v64, %v139
  %vm142 = vcmp.eq.f32.partialorder %v64, 0.0
  %v143 = vand.u32 %v64, 2147483648
  %v144 = vsel %vm142, %v143, %v141
  %v145 = vrsqrt.pop %v67
  %v146 = vmul.f32 %v67, %v145
  %vm147 = vcmp.eq.f32.partialorder %v67, inf
  %v148 = vsel %vm147, %v67, %v146
  %vm149 = vcmp.eq.f32.partialorder %v67, 0.0
  %v150 = vand.u32 %v67, 2147483648
  %v151 = vsel %vm149, %v150, %v148
  %v152 = vrsqrt.pop %v70
  %v153 = vmul.f32 %v70, %v152
  %vm154 = vcmp.eq.f32.partialorder %v70, inf
  %v155 = vsel %vm154, %v70, %v153
  %vm156 = vcmp.eq.f32.partialorder %v70, 0.0
  %v157 = vand.u32 %v70, 2147483648
  %v158 = vsel %vm156, %v157, %v155
  %v159 = vrsqrt.pop %v73
  %v160 = vmul.f32 %v73, %v159
  %vm161 = vcmp.eq.f32.partialorder %v73, inf
  %v162 = vsel %vm161, %v73, %v160
  %vm163 = vcmp.eq.f32.partialorder %v73, 0.0
  %v164 = vand.u32 %v73, 2147483648
  %v165 = vsel %vm163, %v164, %v162
  %v166 = vrsqrt.pop %v76
  %v167 = vmul.f32 %v76, %v166
  %vm168 = vcmp.eq.f32.partialorder %v76, inf
  %v169 = vsel %vm168, %v76, %v167
  %vm170 = vcmp.eq.f32.partialorder %v76, 0.0
  %v171 = vand.u32 %v76, 2147483648
  %v172 = vsel %vm170, %v171, %v169
  %v173 = vrsqrt.pop %v79
  %v174 = vmul.f32 %v79, %v173
  %vm175 = vcmp.eq.f32.partialorder %v79, inf
  %v176 = vsel %vm175, %v79, %v174
  %vm177 = vcmp.eq.f32.partialorder %v79, 0.0
  %v178 = vand.u32 %v79, 2147483648
  %v179 = vsel %vm177, %v178, %v176
  %v180 = vrsqrt.pop %v82
  %v181 = vmul.f32 %v82, %v180
  %vm182 = vcmp.eq.f32.partialorder %v82, inf
  %v183 = vsel %vm182, %v82, %v181
  %vm184 = vcmp.eq.f32.partialorder %v82, 0.0
  %v185 = vand.u32 %v82, 2147483648
  %v186 = vsel %vm184, %v185, %v183
  %v187 = vrsqrt.pop %v85
  %v188 = vmul.f32 %v85, %v187
  %vm189 = vcmp.eq.f32.partialorder %v85, inf
  %v190 = vsel %vm189, %v85, %v188
  %vm191 = vcmp.eq.f32.partialorder %v85, 0.0
  %v192 = vand.u32 %v85, 2147483648
  %v193 = vsel %vm191, %v192, %v190
  %v194 = vrsqrt.pop %v88
  %v195 = vmul.f32 %v88, %v194
  %vm196 = vcmp.eq.f32.partialorder %v88, inf
  %v197 = vsel %vm196, %v88, %v195
  %vm198 = vcmp.eq.f32.partialorder %v88, 0.0
  %v199 = vand.u32 %v88, 2147483648
  %v200 = vsel %vm198, %v199, %v197
  %vm201 = vcmask 7168
  %202 = vst.msk [vmem:[%s1] sm:$0xff] %vm201, %v95
  %203 = vst.msk [vmem:[%s1 + $0x8] sm:$0xff] %vm201, %v102
  %204 = vst.msk [vmem:[%s1 + $0x10] sm:$0xff] %vm201, %v109
  %205 = vst.msk [vmem:[%s1 + $0x18] sm:$0xff] %vm201, %v116
  %206 = vst.msk [vmem:[%s1 + $0x20] sm:$0xff] %vm201, %v123
  %207 = vst.msk [vmem:[%s1 + $0x28] sm:$0xff] %vm201, %v130
  %208 = vst.msk [vmem:[%s1 + $0x30] sm:$0xff] %vm201, %v137
  %209 = vst.msk [vmem:[%s1 + $0x38] sm:$0xff] %vm201, %v144
  %210 = vst.msk [vmem:[%s1 + $0x40] sm:$0xff] %vm201, %v151
  %211 = vst.msk [vmem:[%s1 + $0x48] sm:$0xff] %vm201, %v158
  %212 = vst.msk [vmem:[%s1 + $0x50] sm:$0xff] %vm201, %v165
  %213 = vst.msk [vmem:[%s1 + $0x58] sm:$0xff] %vm201, %v172
  %214 = vst.msk [vmem:[%s1 + $0x60] sm:$0xff] %vm201, %v179
  %215 = vst.msk [vmem:[%s1 + $0x68] sm:$0xff] %vm201, %v186
  %216 = vst.msk [vmem:[%s1 + $0x70] sm:$0xff] %vm201, %v193
  %217 = vst.msk [vmem:[%s1 + $0x78] sm:$0xff] %vm201, %v200
  // Predicated region
  $region6: #{transe_score.1} parent=0 // pred_check
    _
  $region7: #{transe_score.1} parent=0 // pred_check_branch
    %219 = sbr.rel (0) target = $region9
  $region8: #{transe_score.1} parent=0 // pred_region
    _
  $region9: #{transe_score.1} parent=0 // pred_fallthru
    _
  // Predicated region
  $region10: #{transe_score.1} parent=0 // pred_check
    _
  $region11: #{transe_score.1} parent=0 // pred_check_branch
    %221 = sbr.rel (0) target = $region13
  $region12: #{transe_score.1} parent=0 // pred_region
    _
  $region13: #{transe_score.1} parent=0 // pred_fallthru
    _

</llo_original>
